<compile_context>
chip_gen: v7x
topology: tpu7x:2x2x1
jax: 0.10.0
libtpu: 0.0.40
codegen_flags: <defaults>
</compile_context>

<pallas_src>
import jax
import jax.numpy as jnp
import numpy as np
from jax.experimental import pallas as pl
from jax.experimental.pallas import tpu as pltpu


def _mha_kernel(q_ref, k_ref, v_ref, a_ref, wvo_ref, o_ref):
    # q_ref/k_ref/v_ref: (L, d_model) bf16 for this batch element.
    # a_ref, wvo_ref:    (d_model, d_model) bf16 folded weights.

    # Folded Q/K projection + 1/sqrt(d_k) scale: scores = (Q @ A) @ K^T.
    qa = jnp.dot(q_ref[...], a_ref[...],
                 preferred_element_type=jnp.float32).astype(jnp.bfloat16)      # (Lq, d_model)
    # Contract last dims directly (no XLU transpose of K).
    scores = jnp.einsum("qm,km->qk", qa, k_ref[...],
                        preferred_element_type=jnp.float32)                     # (Lq, Lk)

    # Numerically-stable softmax in f32; reciprocal on the EUP.
    scores = scores - jnp.max(scores, axis=-1, keepdims=True)
    e = jnp.exp(scores)
    attn = e * pl.reciprocal(jnp.sum(e, axis=-1, keepdims=True), approx=True)
    # TODO(synk): nn.Dropout(p=0.1) on attn omitted — inference/eval semantics (identity).

    # Folded V-projection + identical-heads concat + W_O: out = attn @ (V @ WVO).
    v_proj = jnp.dot(v_ref[...], wvo_ref[...],
                     preferred_element_type=jnp.float32).astype(jnp.bfloat16)   # (Lk, d_model)
    o_ref[...] = jnp.dot(attn.astype(jnp.bfloat16), v_proj,
                         preferred_element_type=jnp.float32)                    # (Lq, d_model)


def multi_head_attention(Q, K, V, w_q, w_k, w_v, w_o, *, n_heads):
    B, Lq, d_model = Q.shape
    Lk = K.shape[1]
    d_k = w_q.shape[0]
    d_v = w_v.shape[0]
    inv_temperature = 1.0 / (float(d_k) ** 0.5)

    # ---- one-off weight folds in f32 (cheap XLA ops, outside the kernel) ----
    # scores = Q @ W_Q^T @ W_K @ K^T / sqrt(d_k)  ==  Q @ A @ K^T
    a_mat = (w_q.T * inv_temperature) @ w_k                                   # (d_model, d_model)
    # concat(identical heads) @ W_O^T == head @ (sum of W_O column blocks)^T,
    # and head = attn @ (V @ W_V^T)  =>  out = attn @ (V @ WVO).
    wo_eff_t = w_o.reshape(d_model, n_heads, d_v).sum(axis=1).T               # (d_v, d_model)
    wvo = w_v.T @ wo_eff_t                                                    # (d_model, d_model)

    # bf16 MXU operands (f32 accumulation inside the kernel).
    q_bf = Q.astype(jnp.bfloat16)
    k_bf = K.astype(jnp.bfloat16)
    v_bf = V.astype(jnp.bfloat16)
    a_bf = a_mat.astype(jnp.bfloat16)
    wvo_bf = wvo.astype(jnp.bfloat16)

    out = pl.pallas_call(
        _mha_kernel,
        out_shape=jax.ShapeDtypeStruct((B, Lq, d_model), jnp.float32),
        grid=(B,),
        in_specs=[
            pl.BlockSpec((None, Lq, d_model), lambda b: (b, 0, 0)),
            pl.BlockSpec((None, Lk, d_model), lambda b: (b, 0, 0)),
            pl.BlockSpec((None, Lk, d_model), lambda b: (b, 0, 0)),
            pl.BlockSpec((d_model, d_model), lambda b: (0, 0)),
            pl.BlockSpec((d_model, d_model), lambda b: (0, 0)),
        ],
        out_specs=pl.BlockSpec((None, Lq, d_model), lambda b: (b, 0, 0)),
        compiler_params=pltpu.CompilerParams(
            dimension_semantics=("parallel",)),   # shards over 2 TCs on v7x
    )(q_bf, k_bf, v_bf, a_bf, wvo_bf)

    return out


def _reference(Q, K, V, w_q, w_k, w_v, w_o, *, n_heads):
    # Pure-JAX f32 reference mirroring the PyTorch module (unfolded path, so it
    # independently checks both the A and WVO folds in the kernel).
    d_k = w_q.shape[0]
    q = Q @ w_q.T
    k = K @ w_k.T
    v = V @ w_v.T
    scores = jnp.einsum("bqd,bkd->bqk", q, k) / (d_k ** 0.5)
    attn = jax.nn.softmax(scores, axis=-1)
    head = jnp.einsum("bqk,bkd->bqd", attn, v)
    x_cat = jnp.concatenate([head] * n_heads, axis=-1)
    return x_cat @ w_o.T


if __name__ == "__main__":
    # Module config: n_heads is hard-coded to 8 in __init__.
    n_heads = 8
    d_model = 32
    d_k = d_v = d_model // n_heads  # 4
    B, Lq, Lk = 2, 8, 8

    key = jax.random.PRNGKey(0)
    kq, kk, kv, kwq, kwk, kwv, kwo = jax.random.split(key, 7)

    Q = jax.random.normal(kq, (B, Lq, d_model), dtype=jnp.float32)
    K = jax.random.normal(kk, (B, Lk, d_model), dtype=jnp.float32)
    V = jax.random.normal(kv, (B, Lk, d_model), dtype=jnp.float32)

    # Deterministic "Linear" weight init (uniform(-1/sqrt(fan_in), 1/sqrt(fan_in))).
    def init_linear(rng, out_f, in_f):
        bound = 1.0 / (in_f ** 0.5)
        return jax.random.uniform(rng, (out_f, in_f), jnp.float32, -bound, bound)

    w_q = init_linear(kwq, d_k, d_model)
    w_k = init_linear(kwk, d_k, d_model)
    w_v = init_linear(kwv, d_v, d_model)
    w_o = init_linear(kwo, d_model, n_heads * d_v)

    out = multi_head_attention(Q, K, V, w_q, w_k, w_v, w_o, n_heads=n_heads)
    out = jax.block_until_ready(out)

    ref = _reference(Q, K, V, w_q, w_k, w_v, w_o, n_heads=n_heads)
    # Tolerance accounts for bf16 MXU operands (per review: v6e/v7x-native path)
    # and the EUP approximate reciprocal in the softmax denominator.
    np.testing.assert_allclose(np.asarray(out), np.asarray(ref),
                               rtol=1e-2, atol=1e-2)

    print("KERNEL_OK")
</pallas_src>

<mosaic_0001>
module attributes {stable_mosaic.version = 11 : i64} {
  func.func @_mha_kernel(%arg0: i32, %arg1: memref<1x8x32xbf16, #tpu.memory_space<vmem>>, %arg2: memref<1x8x32xbf16, #tpu.memory_space<vmem>>, %arg3: memref<1x8x32xbf16, #tpu.memory_space<vmem>>, %arg4: memref<32x32xbf16, #tpu.memory_space<vmem>>, %arg5: memref<32x32xbf16, #tpu.memory_space<vmem>>, %arg6: memref<1x8x32xf32, #tpu.memory_space<vmem>>) attributes {dimension_semantics = [#tpu.dimension_semantics<parallel>], iteration_bounds = array<i64: 2>, scalar_prefetch = 0 : i64, scratch_operands = 0 : i64, tpu.core_type = #tpu.core_type<tc>, window_params = [{transform_indices = @transform_0, window_bounds = array<i64: 1, 8, 32>}, {transform_indices = @transform_1, window_bounds = array<i64: 1, 8, 32>}, {transform_indices = @transform_2, window_bounds = array<i64: 1, 8, 32>}, {pipeline_mode = #tpu.pipeline_mode<synchronous>, transform_indices = @transform_3, window_bounds = array<i64: 32, 32>}, {pipeline_mode = #tpu.pipeline_mode<synchronous>, transform_indices = @transform_4, window_bounds = array<i64: 32, 32>}, {transform_indices = @transform_5, window_bounds = array<i64: 1, 8, 32>}]} {
    %c0 = arith.constant 0 : index
    %c0_0 = arith.constant 0 : index
    %c0_1 = arith.constant 0 : index
    %0 = vector.load %arg1[%c0, %c0_0, %c0_1] : memref<1x8x32xbf16, #tpu.memory_space<vmem>>, vector<1x8x32xbf16>
    %1 = vector.shape_cast %0 : vector<1x8x32xbf16> to vector<8x32xbf16>
    %c0_2 = arith.constant 0 : index
    %c0_3 = arith.constant 0 : index
    %2 = vector.load %arg4[%c0_2, %c0_3] : memref<32x32xbf16, #tpu.memory_space<vmem>>, vector<32x32xbf16>
    %cst = arith.constant dense<0.000000e+00> : vector<8x32xf32>
    %3 = tpu.matmul %1, %2, %cst {dimension_numbers = #tpu.dot_dimension_numbers<[1], [0], [0], [1], [0, 0, 1, 1], [], []>} : vector<8x32xbf16>, vector<32x32xbf16>, vector<8x32xf32> -> vector<8x32xf32>
    %4 = arith.truncf %3 : vector<8x32xf32> to vector<8x32xbf16>
    %c0_4 = arith.constant 0 : index
    %c0_5 = arith.constant 0 : index
    %c0_6 = arith.constant 0 : index
    %5 = vector.load %arg2[%c0_4, %c0_5, %c0_6] : memref<1x8x32xbf16, #tpu.memory_space<vmem>>, vector<1x8x32xbf16>
    %6 = vector.shape_cast %5 : vector<1x8x32xbf16> to vector<8x32xbf16>
    "tpu.trace_start"() <{level = 10 : i32, message = "qm,km->qk"}> : () -> ()
    %cst_7 = arith.constant dense<0.000000e+00> : vector<8x8xf32>
    %7 = tpu.matmul %4, %6, %cst_7 {dimension_numbers = #tpu.dot_dimension_numbers<[1], [1], [0], [0], [0, 0, 1, 0], [], []>} : vector<8x32xbf16>, vector<8x32xbf16>, vector<8x8xf32> -> vector<8x8xf32>
    "tpu.trace_stop"() : () -> ()
    %cst_8 = arith.constant dense<0xFF800000> : vector<8xf32>
    %8 = vector.multi_reduction <maximumf>, %7, %cst_8 [1] : vector<8x8xf32> to vector<8xf32>
    %9 = vector.shape_cast %8 : vector<8xf32> to vector<8x1xf32>
    %10 = vector.broadcast %9 : vector<8x1xf32> to vector<8x8xf32>
    %11 = arith.subf %7, %10 : vector<8x8xf32>
    %12 = math.exp %11 : vector<8x8xf32>
    %cst_9 = arith.constant dense<0.000000e+00> : vector<8xf32>
    %13 = vector.multi_reduction <add>, %12, %cst_9 [1] : vector<8x8xf32> to vector<8xf32>
    %14 = vector.shape_cast %13 : vector<8xf32> to vector<8x1xf32>
    %15 = tpu.reciprocal %14 {approx = true} : vector<8x1xf32> -> vector<8x1xf32>
    %16 = vector.broadcast %15 : vector<8x1xf32> to vector<8x8xf32>
    %17 = arith.mulf %12, %16 : vector<8x8xf32>
    %c0_10 = arith.constant 0 : index
    %c0_11 = arith.constant 0 : index
    %c0_12 = arith.constant 0 : index
    %18 = vector.load %arg3[%c0_10, %c0_11, %c0_12] : memref<1x8x32xbf16, #tpu.memory_space<vmem>>, vector<1x8x32xbf16>
    %19 = vector.shape_cast %18 : vector<1x8x32xbf16> to vector<8x32xbf16>
    %c0_13 = arith.constant 0 : index
    %c0_14 = arith.constant 0 : index
    %20 = vector.load %arg5[%c0_13, %c0_14] : memref<32x32xbf16, #tpu.memory_space<vmem>>, vector<32x32xbf16>
    %cst_15 = arith.constant dense<0.000000e+00> : vector<8x32xf32>
    %21 = tpu.matmul %19, %20, %cst_15 {dimension_numbers = #tpu.dot_dimension_numbers<[1], [0], [0], [1], [0, 0, 1, 1], [], []>} : vector<8x32xbf16>, vector<32x32xbf16>, vector<8x32xf32> -> vector<8x32xf32>
    %22 = arith.truncf %21 : vector<8x32xf32> to vector<8x32xbf16>
    %23 = arith.truncf %17 : vector<8x8xf32> to vector<8x8xbf16>
    %cst_16 = arith.constant dense<0.000000e+00> : vector<8x32xf32>
    %24 = tpu.matmul %23, %22, %cst_16 {dimension_numbers = #tpu.dot_dimension_numbers<[1], [0], [0], [1], [0, 0, 1, 1], [], []>} : vector<8x8xbf16>, vector<8x32xbf16>, vector<8x32xf32> -> vector<8x32xf32>
    %c0_17 = arith.constant 0 : index
    %c0_18 = arith.constant 0 : index
    %c0_19 = arith.constant 0 : index
    %25 = vector.load %arg6[%c0_17, %c0_18, %c0_19] : memref<1x8x32xf32, #tpu.memory_space<vmem>>, vector<1x8x32xf32>
    %26 = vector.shape_cast %25 : vector<1x8x32xf32> to vector<8x32xf32>
    %27 = vector.shape_cast %24 : vector<8x32xf32> to vector<1x8x32xf32>
    tpu.vector_store %arg6[%c0_17, %c0_18, %c0_19], %27 {strides = array<i32>} : memref<1x8x32xf32, #tpu.memory_space<vmem>>, vector<1x8x32xf32>,
    return
  }
  func.func @transform_0(%arg0: i32) -> (i32, i32, i32) {
    %c0_i32 = arith.constant 0 : i32
    %c0_i32_0 = arith.constant 0 : i32
    %c0_i32_1 = arith.constant 0 : i32
    return %arg0, %c0_i32, %c0_i32_0 : i32, i32, i32
  }
  func.func @transform_1(%arg0: i32) -> (i32, i32, i32) {
    %c0_i32 = arith.constant 0 : i32
    %c0_i32_0 = arith.constant 0 : i32
    %c0_i32_1 = arith.constant 0 : i32
    return %arg0, %c0_i32, %c0_i32_0 : i32, i32, i32
  }
  func.func @transform_2(%arg0: i32) -> (i32, i32, i32) {
    %c0_i32 = arith.constant 0 : i32
    %c0_i32_0 = arith.constant 0 : i32
    %c0_i32_1 = arith.constant 0 : i32
    return %arg0, %c0_i32, %c0_i32_0 : i32, i32, i32
  }
  func.func @transform_3(%arg0: i32) -> (i32, i32) {
    %c0_i32 = arith.constant 0 : i32
    %c0_i32_0 = arith.constant 0 : i32
    %c0_i32_1 = arith.constant 0 : i32
    return %c0_i32, %c0_i32_0 : i32, i32
  }
  func.func @transform_4(%arg0: i32) -> (i32, i32) {
    %c0_i32 = arith.constant 0 : i32
    %c0_i32_0 = arith.constant 0 : i32
    %c0_i32_1 = arith.constant 0 : i32
    return %c0_i32, %c0_i32_0 : i32, i32
  }
  func.func @transform_5(%arg0: i32) -> (i32, i32, i32) {
    %c0_i32 = arith.constant 0 : i32
    %c0_i32_0 = arith.constant 0 : i32
    %c0_i32_1 = arith.constant 0 : i32
    return %arg0, %c0_i32, %c0_i32_0 : i32, i32, i32
  }
}

</mosaic_0001>

<llo_original>
// kernel: tpu_custom_call.1
$region0: #{tpu_custom_call.1}
  #allocation0 [shape = 'u32[]', space=smem, size = 0x4, offset = 0x4, fixed_abs, tag = 'smem constant byte address 0x4 - core index']
  #allocation1 [shape = 'u32[144,128]{1,0:T(1,128)}', space=vmem, size = 0x12000, scoped, tag = 'internal scratch']
  %s0 = inlined_call_operand.hbm [shape: bf16[2,8,32], index: 0, kind: input, shape index: {}]
  %s1 = inlined_call_operand.hbm [shape: bf16[2,8,32], index: 1, kind: input, shape index: {}]
  %s2 = inlined_call_operand.hbm [shape: bf16[2,8,32], index: 2, kind: input, shape index: {}]
  %s3 = inlined_call_operand.hbm [shape: bf16[32,32], index: 3, kind: input, shape index: {}]
  %s4 = inlined_call_operand.hbm [shape: bf16[32,32], index: 4, kind: input, shape index: {}]
  %s5 = inlined_call_operand.hbm [shape: f32[2,8,32], index: 5, kind: output, shape index: {}]
  %s6 = sld [smem:[#allocation0]]
  $region73: #{tpu_custom_call.1} parent=0
    _
  %s8 = ssub.s32 1, %s6
  %s9 = scalar_select 0, %s8, %s6
  $region1: #{tpu_custom_call.1} parent=0
    #allocation2 [shape = 'u8[4096]{0}', space=vmem, size = 0x1000, scoped, tag = 'input window, operand 0']
    #allocation3 [shape = 's32[2]{0}', space=sflag, size = 0x8, scoped, tag = 'scoped memory for tpu_custom_call.1']
    #allocation4 [shape = 's32[2]{0}', space=sflag, size = 0x8, scoped, tag = 'scoped memory for tpu_custom_call.1']
    #allocation5 [shape = 'u8[4096]{0}', space=vmem, size = 0x1000, scoped, tag = 'input window, operand 1']
    #allocation6 [shape = 's32[2]{0}', space=sflag, size = 0x8, scoped, tag = 'scoped memory for tpu_custom_call.1']
    #allocation7 [shape = 'u8[4096]{0}', space=vmem, size = 0x1000, scoped, tag = 'input window, operand 2']
    #allocation8 [shape = 'u8[8192]{0}', space=vmem, size = 0x2000, scoped, tag = 'input window, operand 3, single buffered']
    #allocation9 [shape = 's32[1]{0}', space=sflag, size = 0x4, scoped, tag = 'scoped memory for tpu_custom_call.1']
    #allocation10 [shape = 'u8[8192]{0}', space=vmem, size = 0x2000, scoped, tag = 'input window, operand 4, single buffered']
    #allocation11 [shape = 'u8[8192]{0}', space=vmem, size = 0x2000, scoped, tag = 'output window, operand 0']
    %10 = vsyncpa [#allocation3], 0
    %s11 = scalar_lea.sflag [#allocation3], 1
    %12 = vsyncpa %s11, 0
    %13 = vsyncpa [#allocation6], 0
    %s14 = scalar_lea.sflag [#allocation6], 1
    %15 = vsyncpa %s14, 0
    %16 = vsyncpa [#allocation9], 0
    %17 = vsyncpa [#allocation4], 0
    %s18 = scalar_lea.sflag [#allocation4], 1
    %19 = vsyncpa %s18, 0
    loop: start=0, step=1, limit=4
    $region2: #{tpu_custom_call.1} parent=1 // loop_pre_header
      _
    $region3: #{tpu_custom_call.1} parent=1 // loop_header
      %s21 = sphi 0, %s25
      %p22 = scmp.ge.s32.totalorder %s21, 4
      %s31 = sphi 0, %s33
      %s34 = sphi 0, %s31
      %s35 = sphi 0, %s34
      %s51 = sphi 0, %s35
      %s57 = sphi 0, %s59
      %s60 = sphi 0, %s57
      %s61 = sphi 0, %s60
      %s77 = sphi 0, %s61
      %s83 = sphi 0, %s85
      %s86 = sphi 0, %s83
      %s87 = sphi 0, %s86
      %s103 = sphi 0, %s87
      %s107 = sphi 0, %s107
      %s109 = sphi 0, %s107
      %s110 = sphi 0, %s109
      %s124 = sphi 0, %s110
      %s128 = sphi 0, %s128
      %s130 = sphi 0, %s128
      %s131 = sphi 0, %s130
      %s145 = sphi 0, %s131
      %s151 = sphi 0, %s153
      %s154 = sphi 0, %s151
      %s155 = sphi 0, %s154
      %s171 = sphi 0, %s155
    $region4: #{tpu_custom_call.1} parent=1 // loop_header_branch
      %24 = sbr.rel (%p22) target = $region8
    $region5: #{tpu_custom_call.1} parent=1 // loop_body
      %s26 = ssub.s32 %s21, 1
      %s27 = ssub.s32 %s21, 2
      %s28 = sadd.s32 %s21, 1
      %s29 = ssub.s32 %s21, %s28
      %p30 = scmp.eq.s32.totalorder %s29, 0
      %s32 = sadd.s32 %s31, 1
      %s33 = scalar_select %p30, %s31, %s32
      %p36 = pneg %p30
      %p37 = scmp.eq.s32.totalorder %s21, 1
      %p38 = por %p36, %p37
      %p39 = scmp.ne.s32.totalorder %s31, %s34
      %p40 = scmp.eq.s32.totalorder %s21, 0
      %p41 = por %p39, %p40
      %p42 = scmp.ne.s32.totalorder %s31, %s34
      %p43 = scmp.eq.s32.totalorder %s26, 1
      %p44 = por %p42, %p43
      %p45 = scmp.ne.s32.totalorder %s34, %s35
      %p46 = scmp.eq.s32.totalorder %s26, 0
      %p47 = por %p45, %p46
      %p48 = scmp.ne.s32.totalorder %s34, %s35
      %p49 = scmp.eq.s32.totalorder %s27, 1
      %p50 = por %p48, %p49
      %p52 = scmp.ne.s32.totalorder %s35, %s51
      %p53 = scmp.eq.s32.totalorder %s27, 0
      %p54 = por %p52, %p53
      %s55 = ssub.s32 %s21, %s28
      %p56 = scmp.eq.s32.totalorder %s55, 0
      %s58 = sadd.s32 %s57, 1
      %s59 = scalar_select %p56, %s57, %s58
      %p62 = pneg %p56
      %p63 = scmp.eq.s32.totalorder %s21, 1
      %p64 = por %p62, %p63
      %p65 = scmp.ne.s32.totalorder %s57, %s60
      %p66 = scmp.eq.s32.totalorder %s21, 0
      %p67 = por %p65, %p66
      %p68 = scmp.ne.s32.totalorder %s57, %s60
      %p69 = scmp.eq.s32.totalorder %s26, 1
      %p70 = por %p68, %p69
      %p71 = scmp.ne.s32.totalorder %s60, %s61
      %p72 = scmp.eq.s32.totalorder %s26, 0
      %p73 = por %p71, %p72
      %p74 = scmp.ne.s32.totalorder %s60, %s61
      %p75 = scmp.eq.s32.totalorder %s27, 1
      %p76 = por %p74, %p75
      %p78 = scmp.ne.s32.totalorder %s61, %s77
      %p79 = scmp.eq.s32.totalorder %s27, 0
      %p80 = por %p78, %p79
      %s81 = ssub.s32 %s21, %s28
      %p82 = scmp.eq.s32.totalorder %s81, 0
      %s84 = sadd.s32 %s83, 1
      %s85 = scalar_select %p82, %s83, %s84
      %p88 = pneg %p82
      %p89 = scmp.eq.s32.totalorder %s21, 1
      %p90 = por %p88, %p89
      %p91 = scmp.ne.s32.totalorder %s83, %s86
      %p92 = scmp.eq.s32.totalorder %s21, 0
      %p93 = por %p91, %p92
      %p94 = scmp.ne.s32.totalorder %s83, %s86
      %p95 = scmp.eq.s32.totalorder %s26, 1
      %p96 = por %p94, %p95
      %p97 = scmp.ne.s32.totalorder %s86, %s87
      %p98 = scmp.eq.s32.totalorder %s26, 0
      %p99 = por %p97, %p98
      %p100 = scmp.ne.s32.totalorder %s86, %s87
      %p101 = scmp.eq.s32.totalorder %s27, 1
      %p102 = por %p100, %p101
      %p104 = scmp.ne.s32.totalorder %s87, %s103
      %p105 = scmp.eq.s32.totalorder %s27, 0
      %p106 = por %p104, %p105
      %s108 = sadd.s32 %s107, 1
      %p111 = scmp.eq.s32.totalorder %s21, 1
      %p112 = scmp.ne.s32.totalorder %s107, %s109
      %p113 = scmp.eq.s32.totalorder %s21, 0
      %p114 = por %p112, %p113
      %p115 = scmp.ne.s32.totalorder %s107, %s109
      %p116 = scmp.eq.s32.totalorder %s26, 1
      %p117 = por %p115, %p116
      %p118 = scmp.ne.s32.totalorder %s109, %s110
      %p119 = scmp.eq.s32.totalorder %s26, 0
      %p120 = por %p118, %p119
      %p121 = scmp.ne.s32.totalorder %s109, %s110
      %p122 = scmp.eq.s32.totalorder %s27, 1
      %p123 = por %p121, %p122
      %p125 = scmp.ne.s32.totalorder %s110, %s124
      %p126 = scmp.eq.s32.totalorder %s27, 0
      %p127 = por %p125, %p126
      %s129 = sadd.s32 %s128, 1
      %p132 = scmp.eq.s32.totalorder %s21, 1
      %p133 = scmp.ne.s32.totalorder %s128, %s130
      %p134 = scmp.eq.s32.totalorder %s21, 0
      %p135 = por %p133, %p134
      %p136 = scmp.ne.s32.totalorder %s128, %s130
      %p137 = scmp.eq.s32.totalorder %s26, 1
      %p138 = por %p136, %p137
      %p139 = scmp.ne.s32.totalorder %s130, %s131
      %p140 = scmp.eq.s32.totalorder %s26, 0
      %p141 = por %p139, %p140
      %p142 = scmp.ne.s32.totalorder %s130, %s131
      %p143 = scmp.eq.s32.totalorder %s27, 1
      %p144 = por %p142, %p143
      %p146 = scmp.ne.s32.totalorder %s131, %s145
      %p147 = scmp.eq.s32.totalorder %s27, 0
      %p148 = por %p146, %p147
      %s149 = ssub.s32 %s21, %s28
      %p150 = scmp.eq.s32.totalorder %s149, 0
      %s152 = sadd.s32 %s151, 1
      %s153 = scalar_select %p150, %s151, %s152
      %p156 = pneg %p150
      %p157 = scmp.eq.s32.totalorder %s21, 1
      %p158 = por %p156, %p157
      %p159 = scmp.ne.s32.totalorder %s151, %s154
      %p160 = scmp.eq.s32.totalorder %s21, 0
      %p161 = por %p159, %p160
      %p162 = scmp.ne.s32.totalorder %s151, %s154
      %p163 = scmp.eq.s32.totalorder %s26, 1
      %p164 = por %p162, %p163
      %p165 = scmp.ne.s32.totalorder %s154, %s155
      %p166 = scmp.eq.s32.totalorder %s26, 0
      %p167 = por %p165, %p166
      %p168 = scmp.ne.s32.totalorder %s154, %s155
      %p169 = scmp.eq.s32.totalorder %s27, 1
      %p170 = por %p168, %p169
      %p172 = scmp.ne.s32.totalorder %s155, %s171
      %p173 = scmp.eq.s32.totalorder %s27, 0
      %p174 = por %p172, %p173
      %p175 = scmp.le.s32.totalorder 1, %s21
      %p176 = scmp.lt.s32.totalorder %s21, 3
      %p177 = pnand %p175, %p176
      %p178 = pneg %p177
      // Predicated region
      $region9: #{tpu_custom_call.1} parent=5 // pred_check
        _
      $region10: #{tpu_custom_call.1} parent=5 // pred_check_branch
        %180 = sbr.rel (%p177) target = $region12
      $region11: #{tpu_custom_call.1} parent=5 // pred_region
        %s181 = ssub.s32 %s21, 1
        // Predicated region
        $region13: #{tpu_custom_call.1} parent=11 // pred_check
          %p182 = pneg %p120
        $region14: #{tpu_custom_call.1} parent=11 // pred_check_branch
          %184 = sbr.rel (%p182) target = $region16
        $region15: #{tpu_custom_call.1} parent=11 // pred_region
          %s186 = ssub.s32 256, 256
          %187 = vsyncadd [#allocation9], %s186
          %s188 = sshll.u32 [#allocation8], 4
          %s189 = int_to_ptr.vmem [resolvable:$true] %s188
          %194 = dma.hbm_to_vmem [thread:$0]  %s3, 256, %s189, [#allocation9], 64, 64, 4
        $region16: #{tpu_custom_call.1} parent=11 // pred_fallthru
          _
        // Predicated region
        $region17: #{tpu_custom_call.1} parent=11 // pred_check
          %p195 = pneg %p141
        $region18: #{tpu_custom_call.1} parent=11 // pred_check_branch
          %197 = sbr.rel (%p195) target = $region20
        $region19: #{tpu_custom_call.1} parent=11 // pred_region
          %s199 = ssub.s32 256, 256
          %200 = vsyncadd [#allocation9], %s199
          %s201 = sshll.u32 [#allocation10], 4
          %s202 = int_to_ptr.vmem [resolvable:$true] %s201
          %207 = dma.hbm_to_vmem [thread:$0]  %s4, 256, %s202, [#allocation9], 64, 64, 4
        $region20: #{tpu_custom_call.1} parent=11 // pred_fallthru
          _
      $region12: #{tpu_custom_call.1} parent=5 // pred_fallthru
        _
      %p208 = scmp.lt.s32.totalorder %s21, 2
      // Predicated region
      $region21: #{tpu_custom_call.1} parent=5 // pred_check
        %p209 = pneg %p208
      $region22: #{tpu_custom_call.1} parent=5 // pred_check_branch
        %211 = sbr.rel (%p209) target = $region24
      $region23: #{tpu_custom_call.1} parent=5 // pred_region
        // Predicated region
        $region25: #{tpu_custom_call.1} parent=23 // pred_check
          %p212 = pneg %p41
        $region26: #{tpu_custom_call.1} parent=23 // pred_check_branch
          %214 = sbr.rel (%p212) target = $region28
        $region27: #{tpu_custom_call.1} parent=23 // pred_region
          %s215 = sand.u32 %s31, 1
          %s216 = scalar_lea.sflag [#allocation3], %s215
          %s217 = sand.u32 %s31, 1
          %s218 = smul.addr %s217, 4
          %s219 = scalar_lea.vmem [#allocation2], %s218
          %s221 = ssub.s32 64, 64
          %222 = vsyncadd %s216, %s221
          %s223 = smul.addr %s21, 64
          %s224 = scalar_lea.hbm %s0, %s223
          %s226 = sshll.u32 %s219, 4
          %s227 = int_to_ptr.vmem [resolvable:$true] %s226
          %229 = dma.hbm_to_vmem [thread:$0]  %s224, 64, %s227, %s216
        $region28: #{tpu_custom_call.1} parent=23 // pred_fallthru
          _
        // Predicated region
        $region29: #{tpu_custom_call.1} parent=23 // pred_check
          %p230 = pneg %p67
        $region30: #{tpu_custom_call.1} parent=23 // pred_check_branch
          %232 = sbr.rel (%p230) target = $region32
        $region31: #{tpu_custom_call.1} parent=23 // pred_region
          %s233 = sand.u32 %s21, 1
          %s234 = scalar_lea.sflag [#allocation6], %s233
          %s235 = sand.u32 %s57, 1
          %s236 = smul.addr %s235, 4
          %s237 = scalar_lea.vmem [#allocation5], %s236
          %s239 = ssub.s32 64, 64
          %240 = vsyncadd %s234, %s239
          %s241 = smul.addr %s21, 64
          %s242 = scalar_lea.hbm %s1, %s241
          %s244 = sshll.u32 %s237, 4
          %s245 = int_to_ptr.vmem [resolvable:$true] %s244
          %247 = dma.hbm_to_vmem [thread:$0]  %s242, 64, %s245, %s234
        $region32: #{tpu_custom_call.1} parent=23 // pred_fallthru
          _
        // Predicated region
        $region33: #{tpu_custom_call.1} parent=23 // pred_check
          %p248 = pneg %p93
        $region34: #{tpu_custom_call.1} parent=23 // pred_check_branch
          %250 = sbr.rel (%p248) target = $region36
        $region35: #{tpu_custom_call.1} parent=23 // pred_region
          %s251 = sand.u32 %s21, 1
          %s252 = scalar_lea.sflag [#allocation6], %s251
          %s253 = sand.u32 %s83, 1
          %s254 = smul.addr %s253, 4
          %s255 = scalar_lea.vmem [#allocation7], %s254
          %s257 = ssub.s32 64, 64
          %258 = vsyncadd %s252, %s257
          %s259 = smul.addr %s21, 64
          %s260 = scalar_lea.hbm %s2, %s259
          %s262 = sshll.u32 %s255, 4
          %s263 = int_to_ptr.vmem [resolvable:$true] %s262
          %265 = dma.hbm_to_vmem [thread:$0]  %s260, 64, %s263, %s252
        $region36: #{tpu_custom_call.1} parent=23 // pred_fallthru
          _
      $region24: #{tpu_custom_call.1} parent=5 // pred_fallthru
        _
      %p266 = scmp.le.s32.totalorder 1, %s21
      %p267 = scmp.lt.s32.totalorder %s21, 3
      %p268 = pnand %p266, %p267
      %p269 = pneg %p268
      // Predicated region
      $region37: #{tpu_custom_call.1} parent=5 // pred_check
        _
      $region38: #{tpu_custom_call.1} parent=5 // pred_check_branch
        %271 = sbr.rel (%p268) target = $region40
      $region39: #{tpu_custom_call.1} parent=5 // pred_region
        %s272 = ssub.s32 %s21, 1
        %s273 = sand.u32 %s34, 1
        %s274 = scalar_lea.sflag [#allocation3], %s273
        %s275 = sand.u32 %s34, 1
        %s276 = smul.addr %s275, 4
        %s277 = scalar_lea.vmem [#allocation2], %s276
        // Predicated region
        $region41: #{tpu_custom_call.1} parent=39 // pred_check
          %p278 = pneg %p47
        $region42: #{tpu_custom_call.1} parent=39 // pred_check_branch
          %280 = sbr.rel (%p278) target = $region44
        $region43: #{tpu_custom_call.1} parent=39 // pred_region
          %281 = dma.done %s274, 64
        $region44: #{tpu_custom_call.1} parent=39 // pred_fallthru
          _
        %s282 = sand.u32 %s26, 1
        %s283 = scalar_lea.sflag [#allocation6], %s282
        %s284 = sand.u32 %s60, 1
        %s285 = smul.addr %s284, 4
        %s286 = scalar_lea.vmem [#allocation5], %s285
        // Predicated region
        $region45: #{tpu_custom_call.1} parent=39 // pred_check
          %p287 = pneg %p73
        $region46: #{tpu_custom_call.1} parent=39 // pred_check_branch
          %289 = sbr.rel (%p287) target = $region48
        $region47: #{tpu_custom_call.1} parent=39 // pred_region
          %290 = dma.done %s283, 64
        $region48: #{tpu_custom_call.1} parent=39 // pred_fallthru
          _
        %s291 = sand.u32 %s26, 1
        %s292 = scalar_lea.sflag [#allocation6], %s291
        %s293 = sand.u32 %s86, 1
        %s294 = smul.addr %s293, 4
        %s295 = scalar_lea.vmem [#allocation7], %s294
        // Predicated region
        $region49: #{tpu_custom_call.1} parent=39 // pred_check
          %p296 = pneg %p99
        $region50: #{tpu_custom_call.1} parent=39 // pred_check_branch
          %298 = sbr.rel (%p296) target = $region52
        $region51: #{tpu_custom_call.1} parent=39 // pred_region
          %299 = dma.done %s292, 64
        $region52: #{tpu_custom_call.1} parent=39 // pred_fallthru
          _
        // Predicated region
        $region53: #{tpu_custom_call.1} parent=39 // pred_check
          %p300 = pneg %p120
        $region54: #{tpu_custom_call.1} parent=39 // pred_check_branch
          %302 = sbr.rel (%p300) target = $region56
        $region55: #{tpu_custom_call.1} parent=39 // pred_region
          %303 = dma.done [#allocation9], 256
        $region56: #{tpu_custom_call.1} parent=39 // pred_fallthru
          _
        // Predicated region
        $region57: #{tpu_custom_call.1} parent=39 // pred_check
          %p304 = pneg %p141
        $region58: #{tpu_custom_call.1} parent=39 // pred_check_branch
          %306 = sbr.rel (%p304) target = $region60
        $region59: #{tpu_custom_call.1} parent=39 // pred_region
          %307 = dma.done [#allocation9], 256
        $region60: #{tpu_custom_call.1} parent=39 // pred_fallthru
          _
        %s308 = sand.u32 %s34, 1
        %s309 = scalar_lea.sflag [#allocation3], %s308
        %s310 = sand.u32 %s34, 1
        %s311 = smul.addr %s310, 4
        %s312 = scalar_lea.vmem [#allocation2], %s311
        %p313 = pneg %p47
        %p314 = pneg %p44
        %s315 = sand.u32 %s26, 1
        %s316 = scalar_lea.sflag [#allocation6], %s315
        %s317 = sand.u32 %s60, 1
        %s318 = smul.addr %s317, 4
        %s319 = scalar_lea.vmem [#allocation5], %s318
        %p320 = pneg %p73
        %p321 = pneg %p70
        %s322 = sand.u32 %s26, 1
        %s323 = scalar_lea.sflag [#allocation6], %s322
        %s324 = sand.u32 %s86, 1
        %s325 = smul.addr %s324, 4
        %s326 = scalar_lea.vmem [#allocation7], %s325
        %p327 = pneg %p99
        %p328 = pneg %p96
        %p329 = pneg %p120
        %p330 = pneg %p117
        %p331 = pneg %p141
        %p332 = pneg %p138
        %p333 = pneg %p167
        %p334 = pneg %p164
        %s335 = sand.u32 %s154, 1
        %s336 = scalar_lea.sflag [#allocation4], %s335
        %s337 = sand.u32 %s154, 1
        %s338 = smul.addr %s337, 8
        %s339 = scalar_lea.vmem [#allocation11], %s338
        %v341 = vld [vmem:[%s277] sm:$0xf]
        %v342 = vld [vmem:[#allocation8] sm:$0xf]
        %v343 = vld [vmem:[#allocation8 + $0x4] sm:$0xf]
        %v344 = vld [vmem:[#allocation8 + $0x8] sm:$0xf]
        %v345 = vld [vmem:[#allocation8 + $0xc] sm:$0xf]
        %v350 = vunpack.c.l.b16 %v342
        %v351 = vunpack.c.l.b16 %v343
        %v352 = vunpack.c.l.b16 %v344
        %v353 = vunpack.c.l.b16 %v345
        %v354 = vpack.c.b16 %v351, %v350
        %v355 = vpack.c.b16 %v353, %v352
        %vm358 = vcmask 261120
        %v360 = vsel %vm358, %v341, 0
        %362 = vmatprep.subr.bf16.mxu0 0
        %363 = vmatpush1.bf16.msra.mxu0 %v354
        %364 = vmatprep.subr.bf16.mxu0 0
        %365 = vmatpush1.bf16.msra.mxu0 %v355
        %366 = vmatprep.subr.bf16.mxu0 0
        %367 = vmatpush1.bf16.msra.mxu0 0
        %368 = vmatprep.subr.bf16.mxu0 0
        %369 = vmatpush1.bf16.msra.mxu0 0
        %370 = vmatprep.subr.bf16.mxu0 0
        %371 = vmatpush1.bf16.msra.mxu0 0
        %372 = vmatprep.subr.bf16.mxu0 0
        %373 = vmatpush1.bf16.msra.mxu0 0
        %374 = vmatprep.subr.bf16.mxu0 0
        %375 = vmatpush1.bf16.msra.mxu0 0
        %376 = vmatprep.subr.bf16.mxu0 0
        %377 = vmatpush1.bf16.msra.mxu0 0
        %378 = vmatprep.subr.bf16.mxu0 0
        %379 = vmatpush1.bf16.msra.mxu0 0
        %380 = vmatprep.subr.bf16.mxu0 0
        %381 = vmatpush1.bf16.msra.mxu0 0
        %382 = vmatprep.subr.bf16.mxu0 0
        %383 = vmatpush1.bf16.msra.mxu0 0
        %384 = vmatprep.subr.bf16.mxu0 0
        %385 = vmatpush1.bf16.msra.mxu0 0
        %386 = vmatprep.subr.bf16.mxu0 0
        %387 = vmatpush1.bf16.msra.mxu0 0
        %388 = vmatprep.subr.bf16.mxu0 0
        %389 = vmatpush1.bf16.msra.mxu0 0
        %390 = vmatprep.subr.bf16.mxu0 0
        %391 = vmatpush1.bf16.msra.mxu0 0
        %392 = vmatprep.subr.bf16.mxu0 0
        %393 = vmatpush1.bf16.msra.mxu0 0
        %394 = vmatprep.mubr.bf16.mxu0 0
        %395 = vmatmul.mubr.bf16.gmra.mrb[0].mxu0 %v360
        %v396 = vpop.f32.mrb[0].mxu0
        %v397 = vadd.f32 0.0, %v396
        %v398 = vpop.f32.mrb[0].mxu0
        %v399 = vpop.f32.mrb[0].mxu0
        %v400 = vpop.f32.mrb[0].mxu0
        %401 = vdwg.mxu0
        %v402 = vpack.c.bf16 %v397, %v397
        %v403 = vld [vmem:[%s286] sm:$0xf]
        %v405 = vsel %vm358, %v402, 0
        %v408 = vsel %vm358, %v403, 0
        %410 = vmatprep.subr.bf16.mxu0 0
        %411 = vmatpush1.bf16.xpose.msra.mxu0 %v408
        %412 = vmatprep.subr.bf16.mxu0 0
        %413 = vmatpush1.bf16.xpose.msra.mxu0 0
        %414 = vmatprep.subr.bf16.mxu0 0
        %415 = vmatpush1.bf16.xpose.msra.mxu0 0
        %416 = vmatprep.subr.bf16.mxu0 0
        %417 = vmatpush1.bf16.xpose.msra.mxu0 0
        %418 = vmatprep.subr.bf16.mxu0 0
        %419 = vmatpush1.bf16.xpose.msra.mxu0 0
        %420 = vmatprep.subr.bf16.mxu0 0
        %421 = vmatpush1.bf16.xpose.msra.mxu0 0
        %422 = vmatprep.subr.bf16.mxu0 0
        %423 = vmatpush1.bf16.xpose.msra.mxu0 0
        %424 = vmatprep.subr.bf16.mxu0 0
        %425 = vmatpush1.bf16.xpose.msra.mxu0 0
        %426 = vmatprep.subr.bf16.mxu0 0
        %427 = vmatpush1.bf16.xpose.msra.mxu0 0
        %428 = vmatprep.subr.bf16.mxu0 0
        %429 = vmatpush1.bf16.xpose.msra.mxu0 0
        %430 = vmatprep.subr.bf16.mxu0 0
        %431 = vmatpush1.bf16.xpose.msra.mxu0 0
        %432 = vmatprep.subr.bf16.mxu0 0
        %433 = vmatpush1.bf16.xpose.msra.mxu0 0
        %434 = vmatprep.subr.bf16.mxu0 0
        %435 = vmatpush1.bf16.xpose.msra.mxu0 0
        %436 = vmatprep.subr.bf16.mxu0 0
        %437 = vmatpush1.bf16.xpose.msra.mxu0 0
        %438 = vmatprep.subr.bf16.mxu0 0
        %439 = vmatpush1.bf16.xpose.msra.mxu0 0
        %440 = vmatprep.subr.bf16.mxu0 0
        %441 = vmatpush1.bf16.xpose.msra.mxu0 0
        %442 = vmatprep.mubr.bf16.mxu0 0
        %443 = vmatmul.mubr.bf16.gmra.mrb[0].mxu0 %v405
        %v444 = vpop.f32.mrb[0].mxu0
        %v445 = vadd.f32 0.0, %v444
        %v446 = vpop.f32.mrb[0].mxu0
        %v447 = vpop.f32.mrb[0].mxu0
        %v448 = vpop.f32.mrb[0].mxu0
        %449 = vdwg.mxu0
        %vm450 = vcmask 64512
        %v451 = vsel %vm450, %v445, -inf
        %452 = vmax.xlane.f32.xlu0 %v451
        %v453 = vpop.xlane.xlu0 %452
        %v454 = vsub.f32 %v445, %v453
        %v455 = vmul.f32 %v454, 1.442695
        %v456 = vpow.pop %v455
        %v457 = vsel %vm450, %v456, 0.0
        %458 = vadd.xlane.f32.xlu0 %v457
        %v459 = vpop.xlane.xlu0 %458
        %v460 = vrcp.pop %v459
        %v461 = vmul.f32 %v456, %v460
        %v462 = vld [vmem:[%s295] sm:$0xf]
        %v463 = vld [vmem:[#allocation10] sm:$0xf]
        %v464 = vld [vmem:[#allocation10 + $0x4] sm:$0xf]
        %v465 = vld [vmem:[#allocation10 + $0x8] sm:$0xf]
        %v466 = vld [vmem:[#allocation10 + $0xc] sm:$0xf]
        %v471 = vunpack.c.l.b16 %v463
        %v472 = vunpack.c.l.b16 %v464
        %v473 = vunpack.c.l.b16 %v465
        %v474 = vunpack.c.l.b16 %v466
        %v475 = vpack.c.b16 %v472, %v471
        %v476 = vpack.c.b16 %v474, %v473
        %v480 = vsel %vm358, %v462, 0
        %482 = vmatprep.subr.bf16.mxu0 0
        %483 = vmatpush1.bf16.msra.mxu0 %v475
        %484 = vmatprep.subr.bf16.mxu0 0
        %485 = vmatpush1.bf16.msra.mxu0 %v476
        %486 = vmatprep.subr.bf16.mxu0 0
        %487 = vmatpush1.bf16.msra.mxu0 0
        %488 = vmatprep.subr.bf16.mxu0 0
        %489 = vmatpush1.bf16.msra.mxu0 0
        %490 = vmatprep.subr.bf16.mxu0 0
        %491 = vmatpush1.bf16.msra.mxu0 0
        %492 = vmatprep.subr.bf16.mxu0 0
        %493 = vmatpush1.bf16.msra.mxu0 0
        %494 = vmatprep.subr.bf16.mxu0 0
        %495 = vmatpush1.bf16.msra.mxu0 0
        %496 = vmatprep.subr.bf16.mxu0 0
        %497 = vmatpush1.bf16.msra.mxu0 0
        %498 = vmatprep.subr.bf16.mxu0 0
        %499 = vmatpush1.bf16.msra.mxu0 0
        %500 = vmatprep.subr.bf16.mxu0 0
        %501 = vmatpush1.bf16.msra.mxu0 0
        %502 = vmatprep.subr.bf16.mxu0 0
        %503 = vmatpush1.bf16.msra.mxu0 0
        %504 = vmatprep.subr.bf16.mxu0 0
        %505 = vmatpush1.bf16.msra.mxu0 0
        %506 = vmatprep.subr.bf16.mxu0 0
        %507 = vmatpush1.bf16.msra.mxu0 0
        %508 = vmatprep.subr.bf16.mxu0 0
        %509 = vmatpush1.bf16.msra.mxu0 0
        %510 = vmatprep.subr.bf16.mxu0 0
        %511 = vmatpush1.bf16.msra.mxu0 0
        %512 = vmatprep.subr.bf16.mxu0 0
        %513 = vmatpush1.bf16.msra.mxu0 0
        %514 = vmatprep.mubr.bf16.mxu0 0
        %515 = vmatmul.mubr.bf16.gmra.mrb[0].mxu0 %v480
        %v516 = vpop.f32.mrb[0].mxu0
        %v517 = vadd.f32 0.0, %v516
        %v518 = vpop.f32.mrb[0].mxu0
        %v519 = vpop.f32.mrb[0].mxu0
        %v520 = vpop.f32.mrb[0].mxu0
        %521 = vdwg.mxu0
        %v522 = vpack.c.bf16 %v517, %v517
        %v523 = vpack.c.bf16 %v461, %v461
        %v525 = vsel %vm450, %v523, 0
        %vm527 = vcmask 1043456
        %v529 = vsel %vm527, %v522, 0
        %531 = vmatprep.subr.bf16.mxu0 0
        %532 = vmatpush1.bf16.msra.mxu0 %v529
        %533 = vmatprep.subr.bf16.mxu0 0
        %534 = vmatpush1.bf16.msra.mxu0 0
        %535 = vmatprep.subr.bf16.mxu0 0
        %536 = vmatpush1.bf16.msra.mxu0 0
        %537 = vmatprep.subr.bf16.mxu0 0
        %538 = vmatpush1.bf16.msra.mxu0 0
        %539 = vmatprep.subr.bf16.mxu0 0
        %540 = vmatpush1.bf16.msra.mxu0 0
        %541 = vmatprep.subr.bf16.mxu0 0
        %542 = vmatpush1.bf16.msra.mxu0 0
        %543 = vmatprep.subr.bf16.mxu0 0
        %544 = vmatpush1.bf16.msra.mxu0 0
        %545 = vmatprep.subr.bf16.mxu0 0
        %546 = vmatpush1.bf16.msra.mxu0 0
        %547 = vmatprep.subr.bf16.mxu0 0
        %548 = vmatpush1.bf16.msra.mxu0 0
        %549 = vmatprep.subr.bf16.mxu0 0
        %550 = vmatpush1.bf16.msra.mxu0 0
        %551 = vmatprep.subr.bf16.mxu0 0
        %552 = vmatpush1.bf16.msra.mxu0 0
        %553 = vmatprep.subr.bf16.mxu0 0
        %554 = vmatpush1.bf16.msra.mxu0 0
        %555 = vmatprep.subr.bf16.mxu0 0
        %556 = vmatpush1.bf16.msra.mxu0 0
        %557 = vmatprep.subr.bf16.mxu0 0
        %558 = vmatpush1.bf16.msra.mxu0 0
        %559 = vmatprep.subr.bf16.mxu0 0
        %560 = vmatpush1.bf16.msra.mxu0 0
        %561 = vmatprep.subr.bf16.mxu0 0
        %562 = vmatpush1.bf16.msra.mxu0 0
        %563 = vmatprep.mubr.bf16.mxu0 0
        %564 = vmatmul.mubr.bf16.gmra.mrb[0].mxu0 %v525
        %v565 = vpop.f32.mrb[0].mxu0
        %v566 = vadd.f32 0.0, %v565
        %v567 = vpop.f32.mrb[0].mxu0
        %v568 = vpop.f32.mrb[0].mxu0
        %v569 = vpop.f32.mrb[0].mxu0
        %570 = vdwg.mxu0
        %571 = vst.msk [vmem:[%s339] sm:$0xff] %vm358, %v566
        %s572 = sand.u32 %s154, 1
        %s573 = scalar_lea.sflag [#allocation4], %s572
        %s574 = sand.u32 %s154, 1
        %s575 = smul.addr %s574, 8
        %s576 = scalar_lea.vmem [#allocation11], %s575
        // Predicated region
        $region61: #{tpu_custom_call.1} parent=39 // pred_check
          %p577 = pneg %p164
        $region62: #{tpu_custom_call.1} parent=39 // pred_check_branch
          %579 = sbr.rel (%p577) target = $region64
        $region63: #{tpu_custom_call.1} parent=39 // pred_region
          %s581 = ssub.s32 128, 128
          %582 = vsyncadd %s573, %s581
          %s583 = smul.addr %s26, 128
          %s584 = scalar_lea.hbm %s5, %s583
          %s586 = sshll.u32 %s576, 4
          %s587 = int_to_ptr.vmem [resolvable:$true] %s586
          %589 = dma.vmem_to_hbm [thread:$0]  %s587, 128, %s584, %s573
        $region64: #{tpu_custom_call.1} parent=39 // pred_fallthru
          _
      $region40: #{tpu_custom_call.1} parent=5 // pred_fallthru
        _
      %p590 = scmp.le.s32.totalorder 2, %s21
      // Predicated region
      $region65: #{tpu_custom_call.1} parent=5 // pred_check
        %p591 = pneg %p590
      $region66: #{tpu_custom_call.1} parent=5 // pred_check_branch
        %593 = sbr.rel (%p591) target = $region68
      $region67: #{tpu_custom_call.1} parent=5 // pred_region
        %s594 = ssub.s32 %s21, 2
        // Predicated region
        $region69: #{tpu_custom_call.1} parent=67 // pred_check
          %p595 = pneg %p170
        $region70: #{tpu_custom_call.1} parent=67 // pred_check_branch
          %597 = sbr.rel (%p595) target = $region72
        $region71: #{tpu_custom_call.1} parent=67 // pred_region
          %s598 = sand.u32 %s155, 1
          %s599 = scalar_lea.sflag [#allocation4], %s598
          %s600 = sand.u32 %s155, 1
          %s601 = smul.addr %s600, 8
          %s602 = scalar_lea.vmem [#allocation11], %s601
          %603 = dma.done %s599, 128
        $region72: #{tpu_custom_call.1} parent=67 // pred_fallthru
          _
      $region68: #{tpu_custom_call.1} parent=5 // pred_fallthru
        _
    $region6: #{tpu_custom_call.1} parent=1 // loop_footer
      %s25 = sadd.s32 1, %s21
    $region7: #{tpu_custom_call.1} parent=1 // loop_footer_branch
      %20 = sbr.rel target = $region3
    $region8: #{tpu_custom_call.1} parent=1 // loop_exit
      _
    %604 = vsyncpa [#allocation3], 1
    %s605 = scalar_lea.sflag [#allocation3], 1
    %606 = vsyncpa %s605, 1
    %607 = vsyncpa [#allocation6], 1
    %s608 = scalar_lea.sflag [#allocation6], 1
    %609 = vsyncpa %s608, 1
    %610 = vsyncpa [#allocation9], 1
    %611 = vsyncpa [#allocation4], 1
    %s612 = scalar_lea.sflag [#allocation4], 1
    %613 = vsyncpa %s612, 1

</llo_original>
